<compile_context>
chip_gen: v7x
topology: tpu7x:2x2x1
jax: 0.10.0
libtpu: 0.0.40
codegen_flags: <defaults>
</compile_context>

<pallas_src>
import math
import functools

import jax
import jax.numpy as jnp
from jax.experimental import pallas as pl
from jax.experimental.pallas import tpu as pltpu


def _sigmoid(x):
    # single EUP op instead of exp + add + divide
    return 0.5 * (jnp.tanh(0.5 * x) + 1.0)


def _tsctnet_kernel(xpad_ref, wdw_ref, bdw_ref, wtt_ref,
                    w1_ref, w2_ref, poolc_ref, expand_ref,
                    ws_ref, wdiff_ref, bsum_ref,
                    out_ref, tpad_ref, *, L, ks, kt):
    f32 = jnp.float32
    pad = (ks - 1) // 2
    padt = (kt - 1) // 2
    W = xpad_ref.shape[1]          # lanes in this block (= BB * C)
    BB = tpad_ref.shape[1]         # samples in this block

    # ---- Model: subtract mean over time (torch.mean(x, dim=1, keepdim=True)) ----
    # pad rows of xpad are zero, so summing the padded slab / L gives the mean.
    xpad = xpad_ref[...]                                          # (L+ks-1, W)
    seq_last = jnp.sum(xpad, axis=0, keepdims=True) * (1.0 / L)   # (1, W)
    x0 = xpad_ref[pl.ds(pad, L), :] - seq_last                    # (L, W)

    # ---- Linear_Seasonal part of the fused output: independent of the gates ----
    out_s = jnp.dot(ws_ref[...], x0, preferred_element_type=f32)  # (P, W)

    # ---- series_decomp_conv: depthwise Conv1d(groups=ch_in, 'same') as ks
    #      shifted adds of the zero-padded raw input.  The mean subtraction is
    #      folded through the conv with an in-kernel edge-weight map:
    #        edge_w[l, w] = sum_{k : 0 <= l+k-pad < L} wdw[k, w]            ----
    wdw = wdw_ref[...]                                            # (ks, W)
    row = jax.lax.broadcasted_iota(jnp.int32, (L, W), 0)          # sublane index
    acc = xpad_ref[pl.ds(0, L), :] * wdw[0:1, :]
    edge_w = jnp.logical_and(row >= pad, row < L + pad).astype(f32) * wdw[0:1, :]
    for k in range(1, ks):
        acc = acc + xpad_ref[pl.ds(k, L), :] * wdw[k:k + 1, :]
        mk = jnp.logical_and(row >= pad - k, row < L + pad - k).astype(f32)
        edge_w = edge_w + mk * wdw[k:k + 1, :]
    moving_mean = acc - seq_last * edge_w + bdw_ref[...]          # (L, W)

    # ---- channel_gate: avg over L, per-sample MLP (block-diagonal weights),
    #      sigmoid scale ----
    y = jnp.mean(moving_mean, axis=0, keepdims=True)              # (1, W)
    h = jnp.maximum(jnp.dot(y, w1_ref[...], preferred_element_type=f32), 0.0)
    z = _sigmoid(jnp.dot(h, w2_ref[...], preferred_element_type=f32))   # (1, W)
    channel_map = moving_mean * z                                 # (L, W)

    # ---- temporal_gate: per-sample avg over C, Conv1d(1,1,kt,'same') along L
    #      as kt shifted adds of a zero-padded scratch, sigmoid gate ----
    t = jnp.dot(channel_map, poolc_ref[...], preferred_element_type=f32)  # (L, BB)
    if padt > 0:
        zero_pad = jnp.zeros((padt, BB), f32)
        tpad_ref[pl.ds(0, padt), :] = zero_pad
        tpad_ref[pl.ds(padt + L, padt), :] = zero_pad
    tpad_ref[pl.ds(padt, L), :] = t
    wtt = wtt_ref[...]                                            # (kt, BB)
    u = tpad_ref[pl.ds(0, L), :] * wtt[0:1, :]
    for k in range(1, kt):
        u = u + tpad_ref[pl.ds(k, L), :] * wtt[k:k + 1, :]
    wt_gate = _sigmoid(u)                                         # (L, BB)
    gate_full = jnp.dot(wt_gate, expand_ref[...], preferred_element_type=f32)  # (L, W)
    temporal_map = gate_full * channel_map                        # (L, W)

    # ---- fused Linear_Seasonal / Linear_Trend + add back seq_last ----
    out = (out_s
           + jnp.dot(wdiff_ref[...], temporal_map, preferred_element_type=f32)
           + bsum_ref[...] + seq_last)                            # (P, W)
    out_ref[...] = out.astype(out_ref.dtype)


def tsctnet_forward(x, params, *, ks, reduction, batch_block=None):
    B, L, C = x.shape
    P = params["ws"].shape[0]
    kt = int(params["wt_conv"].shape[0])
    assert ks % 2 == 1 and kt % 2 == 1, "only odd kernel sizes (symmetric 'same' pad)"
    pad = (ks - 1) // 2

    # By default take the whole batch in one grid step (lane-dense, amortizes
    # per-step overhead).  On v7x set batch_block=B//2 so both TCs get work
    # (then BB*C must be a multiple of 128).
    BB = B if batch_block is None else batch_block
    assert B % BB == 0
    G = B // BB
    W = BB * C                                                    # lanes per step

    f32 = jnp.float32

    # (L, B*C) slab, columns ordered (batch, channel); zero-pad L for 'same' conv.
    x2 = jnp.transpose(x, (1, 0, 2)).reshape(L, B * C).astype(f32)
    xpad = jnp.pad(x2, ((pad, pad), (0, 0)))                      # (L+ks-1, B*C)

    # depthwise conv taps / bias, tiled across the batch block.
    wdw = params["wdw"].astype(f32)                               # (ks, C)
    wdw_t = jnp.tile(wdw, (1, BB))                                # (ks, W)
    bdw_t = jnp.tile(params["bdw"].astype(f32), (1, BB))          # (1, W)

    # channel-gate MLP as block-diagonal weights over the batch block.
    eye_bb = jnp.eye(BB, dtype=f32)
    w1bd = jnp.kron(eye_bb, params["w1t"].astype(f32))            # (W, BB*Cr)
    if reduction:
        w2bd = jnp.kron(eye_bb, params["w2t"].astype(f32))        # (BB*Cr, W)
    else:
        w2bd = jnp.eye(W, dtype=f32)                              # sigmoid(relu(.)) directly

    # temporal gate: per-sample channel pooling / broadcast matrices + taps.
    poolc = jnp.kron(eye_bb, jnp.full((C, 1), 1.0 / C, f32))      # (W, BB)
    expand = jnp.kron(eye_bb, jnp.ones((1, C), f32))              # (BB, W)
    wt_t = jnp.tile(params["wt_conv"].astype(f32).reshape(kt, 1), (1, BB))  # (kt, BB)

    # fused output linears.
    ws = params["ws"].astype(f32)                                 # (P, L)
    wdiff = (params["wtr"] - params["ws"]).astype(f32)            # (P, L)
    bsum = (params["bs"] + params["btr"]).astype(f32).reshape(P, 1)

    cr_b = w1bd.shape[1]
    h2 = w2bd.shape[0]
    Lp = L + ks - 1
    Lt = L + kt - 1

    kernel = functools.partial(_tsctnet_kernel, L=L, ks=ks, kt=kt)
    out2 = pl.pallas_call(
        kernel,
        out_shape=jax.ShapeDtypeStruct((P, B * C), x.dtype),
        grid_spec=pltpu.PrefetchScalarGridSpec(
            num_scalar_prefetch=0,
            grid=(G,),
            in_specs=[
                pl.BlockSpec((Lp, W), lambda g: (0, g)),          # zero-padded x slab
                pl.BlockSpec((ks, W), lambda g: (0, 0)),          # depthwise taps
                pl.BlockSpec((1, W), lambda g: (0, 0)),           # depthwise bias
                pl.BlockSpec((kt, BB), lambda g: (0, 0)),         # temporal taps
                pl.BlockSpec((W, cr_b), lambda g: (0, 0)),        # channel fc1 (block-diag)
                pl.BlockSpec((h2, W), lambda g: (0, 0)),          # channel fc2 (block-diag)
                pl.BlockSpec((W, BB), lambda g: (0, 0)),          # channel pool matrix
                pl.BlockSpec((BB, W), lambda g: (0, 0)),          # gate broadcast matrix
                pl.BlockSpec((P, L), lambda g: (0, 0)),           # Linear_Seasonal W
                pl.BlockSpec((P, L), lambda g: (0, 0)),           # Wtr - Ws
                pl.BlockSpec((P, 1), lambda g: (0, 0)),           # bs + btr
            ],
            out_specs=pl.BlockSpec((P, W), lambda g: (0, g)),
            scratch_shapes=[pltpu.VMEM((Lt, BB), jnp.float32)],
        ),
        compiler_params=pltpu.CompilerParams(
            dimension_semantics=("parallel",)),
    )(xpad, wdw_t, bdw_t, wt_t, w1bd, w2bd, poolc, expand,
      ws, wdiff, bsum)

    # (P, B*C) -> (B, P, C)
    return jnp.transpose(out2.reshape(P, B, C), (1, 0, 2))


def reference_forward(x, params, *, ks, reduction):
    """Pure-JAX reference (mirrors the PyTorch module) for validation."""
    B, L, C = x.shape
    P = params["ws"].shape[0]
    pad = (ks - 1) // 2
    kt = params["wt_conv"].shape[0]
    padt = (kt - 1) // 2

    seq_last = jnp.mean(x, axis=1, keepdims=True)                 # (B, 1, C)
    x0 = x - seq_last
    x0p = jnp.pad(x0, ((0, 0), (pad, pad), (0, 0)))
    mm = sum(x0p[:, k:k + L, :] * params["wdw"][k][None, None, :] for k in range(ks))
    mm = mm + params["bdw"][None]                                 # (B, L, C)
    y = jnp.mean(mm, axis=1)                                      # (B, C)
    h = jnp.maximum(y @ params["w1t"], 0.0)
    z = jax.nn.sigmoid(h @ params["w2t"]) if reduction else jax.nn.sigmoid(h)
    channel_map = mm * z[:, None, :]
    t = jnp.mean(channel_map, axis=2, keepdims=True)              # (B, L, 1)
    tp = jnp.pad(t, ((0, 0), (padt, padt), (0, 0)))
    u = sum(tp[:, k:k + L, :] * params["wt_conv"][k] for k in range(kt))
    temporal_map = jax.nn.sigmoid(u) * channel_map
    res = x0 - temporal_map
    so = jnp.einsum("pl,blc->bpc", params["ws"], res) + params["bs"].reshape(1, P, 1)
    to = jnp.einsum("pl,blc->bpc", params["wtr"], temporal_map) + params["btr"].reshape(1, P, 1)
    return so + to + seq_last


if __name__ == "__main__":
    # configs: seq_len=16, pred_len=8, enc_in=8, kernel_size=3, reduction=True, r=2, is_adapt=True
    B, L, P, C, r, ks = 2, 16, 8, 8, 2, 3
    reduction, is_adapt = True, True
    assert ks % 2 == 1, "only odd kernel_size supported ('same' padding symmetric)"

    # temporal_gate kernel size (same formula as the PyTorch module, b=1, gama=2)
    kt = int(abs((math.log(C, 2) + 1) / 2))
    if is_adapt:
        kt = kt if (kt % 2) else kt + 1
    else:
        kt = ks
    assert kt % 2 == 1

    key = jax.random.PRNGKey(0)
    ks_ = jax.random.split(key, 12)
    x = jax.random.normal(ks_[0], (B, L, C), jnp.float32)

    Cr = C // r if reduction else C
    params = dict(
        wdw=0.2 * jax.random.normal(ks_[1], (ks, C), jnp.float32),    # depthwise conv weight (taps, ch) == torch (C,1,ks) transposed
        bdw=0.1 * jax.random.normal(ks_[2], (1, C), jnp.float32),     # depthwise conv bias
        w1t=0.3 * jax.random.normal(ks_[3], (C, Cr), jnp.float32),    # channel-gate fc1 weight, transposed
        w2t=0.3 * jax.random.normal(ks_[4], (Cr, C), jnp.float32),    # channel-gate fc2 weight, transposed
        wt_conv=0.5 * jax.random.normal(ks_[5], (kt,), jnp.float32),  # temporal-gate conv taps
        ws=0.2 * jax.random.normal(ks_[6], (P, L), jnp.float32),      # Linear_Seasonal weight
        bs=0.1 * jax.random.normal(ks_[7], (P,), jnp.float32),
        wtr=0.2 * jax.random.normal(ks_[8], (P, L), jnp.float32),     # Linear_Trend weight
        btr=0.1 * jax.random.normal(ks_[9], (P,), jnp.float32),
    )

    out = tsctnet_forward(x, params, ks=ks, reduction=reduction)
    out = jax.block_until_ready(out)
    assert out.shape == (B, P, C)

    ref = reference_forward(x, params, ks=ks, reduction=reduction)
    err = float(jnp.max(jnp.abs(out - ref)))
    assert err < 5e-4, f"mismatch vs reference: {err}"

    print("KERNEL_OK")
</pallas_src>

<mosaic_0001>
module attributes {stable_mosaic.version = 11 : i64} {
  func.func @_tsctnet_kernel(%arg0: i32, %arg1: memref<18x16xf32, #tpu.memory_space<vmem>>, %arg2: memref<3x16xf32, #tpu.memory_space<vmem>>, %arg3: memref<1x16xf32, #tpu.memory_space<vmem>>, %arg4: memref<3x2xf32, #tpu.memory_space<vmem>>, %arg5: memref<16x8xf32, #tpu.memory_space<vmem>>, %arg6: memref<8x16xf32, #tpu.memory_space<vmem>>, %arg7: memref<16x2xf32, #tpu.memory_space<vmem>>, %arg8: memref<2x16xf32, #tpu.memory_space<vmem>>, %arg9: memref<8x16xf32, #tpu.memory_space<vmem>>, %arg10: memref<8x16xf32, #tpu.memory_space<vmem>>, %arg11: memref<8x1xf32, #tpu.memory_space<vmem>>, %arg12: memref<8x16xf32, #tpu.memory_space<vmem>>, %arg13: memref<18x2xf32, #tpu.memory_space<vmem>>) attributes {dimension_semantics = [#tpu.dimension_semantics<parallel>], iteration_bounds = array<i64: 1>, scalar_prefetch = 0 : i64, scratch_operands = 1 : i64, tpu.core_type = #tpu.core_type<tc>, window_params = [{transform_indices = @transform_0, window_bounds = array<i64: 18, 16>}, {pipeline_mode = #tpu.pipeline_mode<synchronous>, transform_indices = @transform_1, window_bounds = array<i64: 3, 16>}, {pipeline_mode = #tpu.pipeline_mode<synchronous>, transform_indices = @transform_2, window_bounds = array<i64: 1, 16>}, {pipeline_mode = #tpu.pipeline_mode<synchronous>, transform_indices = @transform_3, window_bounds = array<i64: 3, 2>}, {pipeline_mode = #tpu.pipeline_mode<synchronous>, transform_indices = @transform_4, window_bounds = array<i64: 16, 8>}, {pipeline_mode = #tpu.pipeline_mode<synchronous>, transform_indices = @transform_5, window_bounds = array<i64: 8, 16>}, {pipeline_mode = #tpu.pipeline_mode<synchronous>, transform_indices = @transform_6, window_bounds = array<i64: 16, 2>}, {pipeline_mode = #tpu.pipeline_mode<synchronous>, transform_indices = @transform_7, window_bounds = array<i64: 2, 16>}, {pipeline_mode = #tpu.pipeline_mode<synchronous>, transform_indices = @transform_8, window_bounds = array<i64: 8, 16>}, {pipeline_mode = #tpu.pipeline_mode<synchronous>, transform_indices = @transform_9, window_bounds = array<i64: 8, 16>}, {pipeline_mode = #tpu.pipeline_mode<synchronous>, transform_indices = @transform_10, window_bounds = array<i64: 8, 1>}, {transform_indices = @transform_11, window_bounds = array<i64: 8, 16>}]} {
    %c0 = arith.constant 0 : index
    %c0_0 = arith.constant 0 : index
    %0 = vector.load %arg1[%c0, %c0_0] : memref<18x16xf32, #tpu.memory_space<vmem>>, vector<18x16xf32>
    %cst = arith.constant dense<0.000000e+00> : vector<16xf32>
    %1 = vector.multi_reduction <add>, %0, %cst [0] : vector<18x16xf32> to vector<16xf32>
    %2 = vector.shape_cast %1 : vector<16xf32> to vector<1x16xf32>
    %cst_1 = arith.constant 6.250000e-02 : f32
    %3 = vector.broadcast %cst_1 : f32 to vector<1x16xf32>
    %4 = arith.mulf %2, %3 : vector<1x16xf32>
    %c1 = arith.constant 1 : index
    %c0_2 = arith.constant 0 : index
    %5 = vector.load %arg1[%c1, %c0_2] : memref<18x16xf32, #tpu.memory_space<vmem>>, vector<16x16xf32>
    %6 = vector.broadcast %4 : vector<1x16xf32> to vector<16x16xf32>
    %7 = arith.subf %5, %6 : vector<16x16xf32>
    %c0_3 = arith.constant 0 : index
    %c0_4 = arith.constant 0 : index
    %8 = vector.load %arg9[%c0_3, %c0_4] : memref<8x16xf32, #tpu.memory_space<vmem>>, vector<8x16xf32>
    %cst_5 = arith.constant dense<0.000000e+00> : vector<8x16xf32>
    %9 = tpu.matmul %8, %7, %cst_5 {dimension_numbers = #tpu.dot_dimension_numbers<[1], [0], [0], [1], [0, 0, 1, 1], [], []>} : vector<8x16xf32>, vector<16x16xf32>, vector<8x16xf32> -> vector<8x16xf32>
    %c0_6 = arith.constant 0 : index
    %c0_7 = arith.constant 0 : index
    %10 = vector.load %arg2[%c0_6, %c0_7] : memref<3x16xf32, #tpu.memory_space<vmem>>, vector<3x16xf32>
    %11 = tpu.iota {dimensions = array<i32: 0>} : vector<16x16xi32>
    %c0_8 = arith.constant 0 : index
    %c0_9 = arith.constant 0 : index
    %12 = vector.load %arg1[%c0_8, %c0_9] : memref<18x16xf32, #tpu.memory_space<vmem>>, vector<16x16xf32>
    %13 = vector.extract_strided_slice %10 {offsets = [0, 0], sizes = [1, 16], strides = [1, 1]} : vector<3x16xf32> to vector<1x16xf32>
    %14 = vector.broadcast %13 : vector<1x16xf32> to vector<16x16xf32>
    %15 = arith.mulf %12, %14 : vector<16x16xf32>
    %c1_i32 = arith.constant 1 : i32
    %16 = vector.broadcast %c1_i32 : i32 to vector<16x16xi32>
    %17 = arith.cmpi sge, %11, %16 : vector<16x16xi32>
    %c17_i32 = arith.constant 17 : i32
    %18 = vector.broadcast %c17_i32 : i32 to vector<16x16xi32>
    %19 = arith.cmpi slt, %11, %18 : vector<16x16xi32>
    %20 = arith.andi %17, %19 : vector<16x16xi1>
    %21 = arith.extui %20 : vector<16x16xi1> to vector<16x16xi32>
    %22 = arith.sitofp %21 : vector<16x16xi32> to vector<16x16xf32>
    %23 = vector.extract_strided_slice %10 {offsets = [0, 0], sizes = [1, 16], strides = [1, 1]} : vector<3x16xf32> to vector<1x16xf32>
    %24 = vector.broadcast %23 : vector<1x16xf32> to vector<16x16xf32>
    %25 = arith.mulf %22, %24 : vector<16x16xf32>
    %c1_10 = arith.constant 1 : index
    %c0_11 = arith.constant 0 : index
    %26 = vector.load %arg1[%c1_10, %c0_11] : memref<18x16xf32, #tpu.memory_space<vmem>>, vector<16x16xf32>
    %27 = vector.extract_strided_slice %10 {offsets = [1, 0], sizes = [1, 16], strides = [1, 1]} : vector<3x16xf32> to vector<1x16xf32>
    %28 = vector.broadcast %27 : vector<1x16xf32> to vector<16x16xf32>
    %29 = arith.mulf %26, %28 : vector<16x16xf32>
    %30 = arith.addf %15, %29 : vector<16x16xf32>
    %c0_i32 = arith.constant 0 : i32
    %31 = vector.broadcast %c0_i32 : i32 to vector<16x16xi32>
    %32 = arith.cmpi sge, %11, %31 : vector<16x16xi32>
    %c16_i32 = arith.constant 16 : i32
    %33 = vector.broadcast %c16_i32 : i32 to vector<16x16xi32>
    %34 = arith.cmpi slt, %11, %33 : vector<16x16xi32>
    %35 = arith.andi %32, %34 : vector<16x16xi1>
    %36 = arith.extui %35 : vector<16x16xi1> to vector<16x16xi32>
    %37 = arith.sitofp %36 : vector<16x16xi32> to vector<16x16xf32>
    %38 = vector.extract_strided_slice %10 {offsets = [1, 0], sizes = [1, 16], strides = [1, 1]} : vector<3x16xf32> to vector<1x16xf32>
    %39 = vector.broadcast %38 : vector<1x16xf32> to vector<16x16xf32>
    %40 = arith.mulf %37, %39 : vector<16x16xf32>
    %41 = arith.addf %25, %40 : vector<16x16xf32>
    %c2 = arith.constant 2 : index
    %c0_12 = arith.constant 0 : index
    %42 = vector.load %arg1[%c2, %c0_12] : memref<18x16xf32, #tpu.memory_space<vmem>>, vector<16x16xf32>
    %43 = vector.extract_strided_slice %10 {offsets = [2, 0], sizes = [1, 16], strides = [1, 1]} : vector<3x16xf32> to vector<1x16xf32>
    %44 = vector.broadcast %43 : vector<1x16xf32> to vector<16x16xf32>
    %45 = arith.mulf %42, %44 : vector<16x16xf32>
    %46 = arith.addf %30, %45 : vector<16x16xf32>
    %c-1_i32 = arith.constant -1 : i32
    %47 = vector.broadcast %c-1_i32 : i32 to vector<16x16xi32>
    %48 = arith.cmpi sge, %11, %47 : vector<16x16xi32>
    %c15_i32 = arith.constant 15 : i32
    %49 = vector.broadcast %c15_i32 : i32 to vector<16x16xi32>
    %50 = arith.cmpi slt, %11, %49 : vector<16x16xi32>
    %51 = arith.andi %48, %50 : vector<16x16xi1>
    %52 = arith.extui %51 : vector<16x16xi1> to vector<16x16xi32>
    %53 = arith.sitofp %52 : vector<16x16xi32> to vector<16x16xf32>
    %54 = vector.extract_strided_slice %10 {offsets = [2, 0], sizes = [1, 16], strides = [1, 1]} : vector<3x16xf32> to vector<1x16xf32>
    %55 = vector.broadcast %54 : vector<1x16xf32> to vector<16x16xf32>
    %56 = arith.mulf %53, %55 : vector<16x16xf32>
    %57 = arith.addf %41, %56 : vector<16x16xf32>
    %58 = vector.broadcast %4 : vector<1x16xf32> to vector<16x16xf32>
    %59 = arith.mulf %58, %57 : vector<16x16xf32>
    %60 = arith.subf %46, %59 : vector<16x16xf32>
    %c0_13 = arith.constant 0 : index
    %c0_14 = arith.constant 0 : index
    %61 = vector.load %arg3[%c0_13, %c0_14] : memref<1x16xf32, #tpu.memory_space<vmem>>, vector<1x16xf32>
    %62 = vector.broadcast %61 : vector<1x16xf32> to vector<16x16xf32>
    %63 = arith.addf %60, %62 : vector<16x16xf32>
    %cst_15 = arith.constant dense<0.000000e+00> : vector<16xf32>
    %64 = vector.multi_reduction <add>, %63, %cst_15 [0] : vector<16x16xf32> to vector<16xf32>
    %65 = vector.shape_cast %64 : vector<16xf32> to vector<1x16xf32>
    %cst_16 = arith.constant 1.600000e+01 : f32
    %66 = vector.broadcast %cst_16 : f32 to vector<1x16xf32>
    %67 = arith.divf %65, %66 : vector<1x16xf32>
    %c0_17 = arith.constant 0 : index
    %c0_18 = arith.constant 0 : index
    %68 = vector.load %arg5[%c0_17, %c0_18] : memref<16x8xf32, #tpu.memory_space<vmem>>, vector<16x8xf32>
    %cst_19 = arith.constant dense<0.000000e+00> : vector<1x8xf32>
    %69 = tpu.matmul %67, %68, %cst_19 {dimension_numbers = #tpu.dot_dimension_numbers<[1], [0], [0], [1], [0, 0, 1, 1], [], []>} : vector<1x16xf32>, vector<16x8xf32>, vector<1x8xf32> -> vector<1x8xf32>
    %cst_20 = arith.constant 0.000000e+00 : f32
    %70 = vector.broadcast %cst_20 : f32 to vector<1x8xf32>
    %71 = arith.maximumf %69, %70 : vector<1x8xf32>
    %c0_21 = arith.constant 0 : index
    %c0_22 = arith.constant 0 : index
    %72 = vector.load %arg6[%c0_21, %c0_22] : memref<8x16xf32, #tpu.memory_space<vmem>>, vector<8x16xf32>
    %cst_23 = arith.constant dense<0.000000e+00> : vector<1x16xf32>
    %73 = tpu.matmul %71, %72, %cst_23 {dimension_numbers = #tpu.dot_dimension_numbers<[1], [0], [0], [1], [0, 0, 1, 1], [], []>} : vector<1x8xf32>, vector<8x16xf32>, vector<1x16xf32> -> vector<1x16xf32>
    %cst_24 = arith.constant 5.000000e-01 : f32
    %74 = vector.broadcast %cst_24 : f32 to vector<1x16xf32>
    %75 = arith.mulf %74, %73 : vector<1x16xf32>
    %76 = math.tanh %75 : vector<1x16xf32>
    %cst_25 = arith.constant 1.000000e+00 : f32
    %77 = vector.broadcast %cst_25 : f32 to vector<1x16xf32>
    %78 = arith.addf %76, %77 : vector<1x16xf32>
    %cst_26 = arith.constant 5.000000e-01 : f32
    %79 = vector.broadcast %cst_26 : f32 to vector<1x16xf32>
    %80 = arith.mulf %79, %78 : vector<1x16xf32>
    %81 = vector.broadcast %80 : vector<1x16xf32> to vector<16x16xf32>
    %82 = arith.mulf %63, %81 : vector<16x16xf32>
    %c0_27 = arith.constant 0 : index
    %c0_28 = arith.constant 0 : index
    %83 = vector.load %arg7[%c0_27, %c0_28] : memref<16x2xf32, #tpu.memory_space<vmem>>, vector<16x2xf32>
    %cst_29 = arith.constant dense<0.000000e+00> : vector<16x2xf32>
    %84 = tpu.matmul %82, %83, %cst_29 {dimension_numbers = #tpu.dot_dimension_numbers<[1], [0], [0], [1], [0, 0, 1, 1], [], []>} : vector<16x16xf32>, vector<16x2xf32>, vector<16x2xf32> -> vector<16x2xf32>
    %cst_30 = arith.constant 0.000000e+00 : f32
    %85 = vector.broadcast %cst_30 : f32 to vector<1x2xf32>
    %c0_31 = arith.constant 0 : index
    %c0_32 = arith.constant 0 : index
    %86 = vector.load %arg13[%c0_31, %c0_32] : memref<18x2xf32, #tpu.memory_space<vmem>>, vector<1x2xf32>
    tpu.vector_store %arg13[%c0_31, %c0_32], %85 {strides = array<i32>} : memref<18x2xf32, #tpu.memory_space<vmem>>, vector<1x2xf32>,
    %c17 = arith.constant 17 : index
    %c0_33 = arith.constant 0 : index
    %87 = vector.load %arg13[%c17, %c0_33] : memref<18x2xf32, #tpu.memory_space<vmem>>, vector<1x2xf32>
    tpu.vector_store %arg13[%c17, %c0_33], %85 {strides = array<i32>} : memref<18x2xf32, #tpu.memory_space<vmem>>, vector<1x2xf32>,
    %c1_34 = arith.constant 1 : index
    %c0_35 = arith.constant 0 : index
    %88 = vector.load %arg13[%c1_34, %c0_35] : memref<18x2xf32, #tpu.memory_space<vmem>>, vector<16x2xf32>
    tpu.vector_store %arg13[%c1_34, %c0_35], %84 {strides = array<i32>} : memref<18x2xf32, #tpu.memory_space<vmem>>, vector<16x2xf32>,
    %c0_36 = arith.constant 0 : index
    %c0_37 = arith.constant 0 : index
    %89 = vector.load %arg4[%c0_36, %c0_37] : memref<3x2xf32, #tpu.memory_space<vmem>>, vector<3x2xf32>
    %c0_38 = arith.constant 0 : index
    %c0_39 = arith.constant 0 : index
    %90 = vector.load %arg13[%c0_38, %c0_39] : memref<18x2xf32, #tpu.memory_space<vmem>>, vector<16x2xf32>
    %91 = vector.extract_strided_slice %89 {offsets = [0, 0], sizes = [1, 2], strides = [1, 1]} : vector<3x2xf32> to vector<1x2xf32>
    %92 = vector.broadcast %91 : vector<1x2xf32> to vector<16x2xf32>
    %93 = arith.mulf %90, %92 : vector<16x2xf32>
    %c1_40 = arith.constant 1 : index
    %c0_41 = arith.constant 0 : index
    %94 = vector.load %arg13[%c1_40, %c0_41] : memref<18x2xf32, #tpu.memory_space<vmem>>, vector<16x2xf32>
    %95 = vector.extract_strided_slice %89 {offsets = [1, 0], sizes = [1, 2], strides = [1, 1]} : vector<3x2xf32> to vector<1x2xf32>
    %96 = vector.broadcast %95 : vector<1x2xf32> to vector<16x2xf32>
    %97 = arith.mulf %94, %96 : vector<16x2xf32>
    %98 = arith.addf %93, %97 : vector<16x2xf32>
    %c2_42 = arith.constant 2 : index
    %c0_43 = arith.constant 0 : index
    %99 = vector.load %arg13[%c2_42, %c0_43] : memref<18x2xf32, #tpu.memory_space<vmem>>, vector<16x2xf32>
    %100 = vector.extract_strided_slice %89 {offsets = [2, 0], sizes = [1, 2], strides = [1, 1]} : vector<3x2xf32> to vector<1x2xf32>
    %101 = vector.broadcast %100 : vector<1x2xf32> to vector<16x2xf32>
    %102 = arith.mulf %99, %101 : vector<16x2xf32>
    %103 = arith.addf %98, %102 : vector<16x2xf32>
    %cst_44 = arith.constant 5.000000e-01 : f32
    %104 = vector.broadcast %cst_44 : f32 to vector<16x2xf32>
    %105 = arith.mulf %104, %103 : vector<16x2xf32>
    %106 = math.tanh %105 : vector<16x2xf32>
    %cst_45 = arith.constant 1.000000e+00 : f32
    %107 = vector.broadcast %cst_45 : f32 to vector<16x2xf32>
    %108 = arith.addf %106, %107 : vector<16x2xf32>
    %cst_46 = arith.constant 5.000000e-01 : f32
    %109 = vector.broadcast %cst_46 : f32 to vector<16x2xf32>
    %110 = arith.mulf %109, %108 : vector<16x2xf32>
    %c0_47 = arith.constant 0 : index
    %c0_48 = arith.constant 0 : index
    %111 = vector.load %arg8[%c0_47, %c0_48] : memref<2x16xf32, #tpu.memory_space<vmem>>, vector<2x16xf32>
    %cst_49 = arith.constant dense<0.000000e+00> : vector<16x16xf32>
    %112 = tpu.matmul %110, %111, %cst_49 {dimension_numbers = #tpu.dot_dimension_numbers<[1], [0], [0], [1], [0, 0, 1, 1], [], []>} : vector<16x2xf32>, vector<2x16xf32>, vector<16x16xf32> -> vector<16x16xf32>
    %113 = arith.mulf %112, %82 : vector<16x16xf32>
    %c0_50 = arith.constant 0 : index
    %c0_51 = arith.constant 0 : index
    %114 = vector.load %arg10[%c0_50, %c0_51] : memref<8x16xf32, #tpu.memory_space<vmem>>, vector<8x16xf32>
    %cst_52 = arith.constant dense<0.000000e+00> : vector<8x16xf32>
    %115 = tpu.matmul %114, %113, %cst_52 {dimension_numbers = #tpu.dot_dimension_numbers<[1], [0], [0], [1], [0, 0, 1, 1], [], []>} : vector<8x16xf32>, vector<16x16xf32>, vector<8x16xf32> -> vector<8x16xf32>
    %116 = arith.addf %9, %115 : vector<8x16xf32>
    %c0_53 = arith.constant 0 : index
    %c0_54 = arith.constant 0 : index
    %117 = vector.load %arg11[%c0_53, %c0_54] : memref<8x1xf32, #tpu.memory_space<vmem>>, vector<8x1xf32>
    %118 = vector.broadcast %117 : vector<8x1xf32> to vector<8x16xf32>
    %119 = arith.addf %116, %118 : vector<8x16xf32>
    %120 = vector.broadcast %4 : vector<1x16xf32> to vector<8x16xf32>
    %121 = arith.addf %119, %120 : vector<8x16xf32>
    %c0_55 = arith.constant 0 : index
    %c0_56 = arith.constant 0 : index
    %122 = vector.load %arg12[%c0_55, %c0_56] : memref<8x16xf32, #tpu.memory_space<vmem>>, vector<8x16xf32>
    tpu.vector_store %arg12[%c0_55, %c0_56], %121 {strides = array<i32>} : memref<8x16xf32, #tpu.memory_space<vmem>>, vector<8x16xf32>,
    return
  }
  func.func @transform_0(%arg0: i32) -> (i32, i32) {
    %c0_i32 = arith.constant 0 : i32
    %c0_i32_0 = arith.constant 0 : i32
    return %c0_i32, %arg0 : i32, i32
  }
  func.func @transform_1(%arg0: i32) -> (i32, i32) {
    %c0_i32 = arith.constant 0 : i32
    %c0_i32_0 = arith.constant 0 : i32
    %c0_i32_1 = arith.constant 0 : i32
    return %c0_i32, %c0_i32_0 : i32, i32
  }
  func.func @transform_2(%arg0: i32) -> (i32, i32) {
    %c0_i32 = arith.constant 0 : i32
    %c0_i32_0 = arith.constant 0 : i32
    %c0_i32_1 = arith.constant 0 : i32
    return %c0_i32, %c0_i32_0 : i32, i32
  }
  func.func @transform_3(%arg0: i32) -> (i32, i32) {
    %c0_i32 = arith.constant 0 : i32
    %c0_i32_0 = arith.constant 0 : i32
    %c0_i32_1 = arith.constant 0 : i32
    return %c0_i32, %c0_i32_0 : i32, i32
  }
  func.func @transform_4(%arg0: i32) -> (i32, i32) {
    %c0_i32 = arith.constant 0 : i32
    %c0_i32_0 = arith.constant 0 : i32
    %c0_i32_1 = arith.constant 0 : i32
    return %c0_i32, %c0_i32_0 : i32, i32
  }
  func.func @transform_5(%arg0: i32) -> (i32, i32) {
    %c0_i32 = arith.constant 0 : i32
    %c0_i32_0 = arith.constant 0 : i32
    %c0_i32_1 = arith.constant 0 : i32
    return %c0_i32, %c0_i32_0 : i32, i32
  }
  func.func @transform_6(%arg0: i32) -> (i32, i32) {
    %c0_i32 = arith.constant 0 : i32
    %c0_i32_0 = arith.constant 0 : i32
    %c0_i32_1 = arith.constant 0 : i32
    return %c0_i32, %c0_i32_0 : i32, i32
  }
  func.func @transform_7(%arg0: i32) -> (i32, i32) {
    %c0_i32 = arith.constant 0 : i32
    %c0_i32_0 = arith.constant 0 : i32
    %c0_i32_1 = arith.constant 0 : i32
    return %c0_i32, %c0_i32_0 : i32, i32
  }
  func.func @transform_8(%arg0: i32) -> (i32, i32) {
    %c0_i32 = arith.constant 0 : i32
    %c0_i32_0 = arith.constant 0 : i32
    %c0_i32_1 = arith.constant 0 : i32
    return %c0_i32, %c0_i32_0 : i32, i32
  }
  func.func @transform_9(%arg0: i32) -> (i32, i32) {
    %c0_i32 = arith.constant 0 : i32
    %c0_i32_0 = arith.constant 0 : i32
    %c0_i32_1 = arith.constant 0 : i32
    return %c0_i32, %c0_i32_0 : i32, i32
  }
  func.func @transform_10(%arg0: i32) -> (i32, i32) {
    %c0_i32 = arith.constant 0 : i32
    %c0_i32_0 = arith.constant 0 : i32
    %c0_i32_1 = arith.constant 0 : i32
    return %c0_i32, %c0_i32_0 : i32, i32
  }
  func.func @transform_11(%arg0: i32) -> (i32, i32) {
    %c0_i32 = arith.constant 0 : i32
    %c0_i32_0 = arith.constant 0 : i32
    return %c0_i32, %arg0 : i32, i32
  }
}

</mosaic_0001>

<llo_original>
// kernel: tpu_custom_call.1
$region0: #{tpu_custom_call.1}
  #allocation0 [shape = 'u32[]', space=smem, size = 0x4, offset = 0x4, fixed_abs, tag = 'smem constant byte address 0x4 - core index']
  #allocation1 [shape = 'u32[144,128]{1,0:T(1,128)}', space=vmem, size = 0x12000, scoped, tag = 'internal scratch']
  #allocation2 [shape = 'f32[18,2]{1,0:T(8,128)}', space=vmem, size = 0x3000, scoped, tag = 'scratch operand']
  %s0 = inlined_call_operand.vmem [shape: f32[18,16], index: 0, kind: input, shape index: {}]
  %s1 = inlined_call_operand.vmem [shape: f32[3,16], index: 1, kind: input, shape index: {}]
  %s2 = inlined_call_operand.vmem [shape: f32[1,16], index: 2, kind: input, shape index: {}]
  %s3 = inlined_call_operand.vmem [shape: f32[3,2], index: 3, kind: input, shape index: {}]
  %s4 = inlined_call_operand.vmem [shape: f32[16,8], index: 4, kind: input, shape index: {}]
  %s5 = inlined_call_operand.vmem [shape: f32[8,16], index: 5, kind: input, shape index: {}]
  %s6 = inlined_call_operand.vmem [shape: f32[16,2], index: 6, kind: input, shape index: {}]
  %s7 = inlined_call_operand.vmem [shape: f32[2,16], index: 7, kind: input, shape index: {}]
  %s8 = inlined_call_operand.vmem [shape: f32[8,16], index: 8, kind: input, shape index: {}]
  %s9 = inlined_call_operand.vmem [shape: f32[8,16], index: 9, kind: input, shape index: {}]
  %s10 = inlined_call_operand.vmem [shape: f32[8,1], index: 10, kind: input, shape index: {}]
  %s11 = inlined_call_operand.hbm [shape: f32[8,16], index: 11, kind: output, shape index: {}]
  %s12 = sld [smem:[#allocation0]]
  $region54: #{tpu_custom_call.1} parent=0
    _
  %s14 = ssub.s32 1, %s12
  %s15 = scalar_select 0, %s14, %s12
  $region1: #{tpu_custom_call.1} parent=0
    #allocation3 [shape = 'u8[4096]{0}', space=vmem, size = 0x1000, scoped, tag = 'output window, operand 0, single buffered']
    #allocation4 [shape = 's32[1]{0}', space=sflag, size = 0x4, scoped, tag = 'scoped memory for tpu_custom_call.1']
    %16 = vsyncpa [#allocation4], 0
    // Predicated region
    $region2: #{tpu_custom_call.1} parent=1 // pred_check
      _
    $region3: #{tpu_custom_call.1} parent=1 // pred_check_branch
      %18 = sbr.rel (0) target = $region5
    $region4: #{tpu_custom_call.1} parent=1 // pred_region
      _
    $region5: #{tpu_custom_call.1} parent=1 // pred_fallthru
      _
    // Predicated region
    $region6: #{tpu_custom_call.1} parent=1 // pred_check
      _
    $region7: #{tpu_custom_call.1} parent=1 // pred_check_branch
      %20 = sbr.rel (0) target = $region9
    $region8: #{tpu_custom_call.1} parent=1 // pred_region
      _
    $region9: #{tpu_custom_call.1} parent=1 // pred_fallthru
      _
    // Predicated region
    $region10: #{tpu_custom_call.1} parent=1 // pred_check
      _
    $region11: #{tpu_custom_call.1} parent=1 // pred_check_branch
      %22 = sbr.rel (0) target = $region13
    $region12: #{tpu_custom_call.1} parent=1 // pred_region
      _
    $region13: #{tpu_custom_call.1} parent=1 // pred_fallthru
      _
    // Predicated region
    $region14: #{tpu_custom_call.1} parent=1 // pred_check
      _
    $region15: #{tpu_custom_call.1} parent=1 // pred_check_branch
      %24 = sbr.rel (0) target = $region17
    $region16: #{tpu_custom_call.1} parent=1 // pred_region
      _
    $region17: #{tpu_custom_call.1} parent=1 // pred_fallthru
      _
    // Predicated region
    $region18: #{tpu_custom_call.1} parent=1 // pred_check
      _
    $region19: #{tpu_custom_call.1} parent=1 // pred_check_branch
      %26 = sbr.rel (0) target = $region21
    $region20: #{tpu_custom_call.1} parent=1 // pred_region
      _
    $region21: #{tpu_custom_call.1} parent=1 // pred_fallthru
      _
    // Predicated region
    $region22: #{tpu_custom_call.1} parent=1 // pred_check
      _
    $region23: #{tpu_custom_call.1} parent=1 // pred_check_branch
      %28 = sbr.rel (0) target = $region25
    $region24: #{tpu_custom_call.1} parent=1 // pred_region
      _
    $region25: #{tpu_custom_call.1} parent=1 // pred_fallthru
      _
    // Predicated region
    $region26: #{tpu_custom_call.1} parent=1 // pred_check
      _
    $region27: #{tpu_custom_call.1} parent=1 // pred_check_branch
      %30 = sbr.rel (0) target = $region29
    $region28: #{tpu_custom_call.1} parent=1 // pred_region
      _
    $region29: #{tpu_custom_call.1} parent=1 // pred_fallthru
      _
    // Predicated region
    $region30: #{tpu_custom_call.1} parent=1 // pred_check
      _
    $region31: #{tpu_custom_call.1} parent=1 // pred_check_branch
      %32 = sbr.rel (0) target = $region33
    $region32: #{tpu_custom_call.1} parent=1 // pred_region
      _
    $region33: #{tpu_custom_call.1} parent=1 // pred_fallthru
      _
    // Predicated region
    $region34: #{tpu_custom_call.1} parent=1 // pred_check
      _
    $region35: #{tpu_custom_call.1} parent=1 // pred_check_branch
      %34 = sbr.rel (0) target = $region37
    $region36: #{tpu_custom_call.1} parent=1 // pred_region
      _
    $region37: #{tpu_custom_call.1} parent=1 // pred_fallthru
      _
    // Predicated region
    $region38: #{tpu_custom_call.1} parent=1 // pred_check
      _
    $region39: #{tpu_custom_call.1} parent=1 // pred_check_branch
      %36 = sbr.rel (0) target = $region41
    $region40: #{tpu_custom_call.1} parent=1 // pred_region
      _
    $region41: #{tpu_custom_call.1} parent=1 // pred_fallthru
      _
    // Predicated region
    $region42: #{tpu_custom_call.1} parent=1 // pred_check
      _
    $region43: #{tpu_custom_call.1} parent=1 // pred_check_branch
      %38 = sbr.rel (0) target = $region45
    $region44: #{tpu_custom_call.1} parent=1 // pred_region
      _
    $region45: #{tpu_custom_call.1} parent=1 // pred_fallthru
      _
    %v39 = vld [vmem:[%s0] sm:$0xff]
    %v40 = vld [vmem:[%s0 + $0x8] sm:$0xff]
    %v41 = vld [vmem:[%s0 + $0x10] sm:$0x3]
    %vm42 = vcmask 130048
    %v43 = vsel %vm42, %v39, 0.0
    %v44 = vsel %vm42, %v40, 0.0
    %v45 = vadd.f32 %v43, %v44
    %vm46 = vcmask 123904
    %v47 = vsel %vm46, %v41, 0.0
    %v48 = vadd.f32 %v45, %v47
    %v49 = vrot.slane %v48, 4
    %v50 = vadd.f32 %v48, %v49
    %v51 = vrot.slane %v50, 2
    %v52 = vadd.f32 %v50, %v51
    %v53 = vrot.slane %v52, 1
    %v54 = vadd.f32 %v52, %v53
    %v55 = vmul.f32 %v54, 0.0625
    %v56 = vld [vmem:[%s0 + $0x1] sm:$0xff]
    %v57 = vld [vmem:[%s0 + $0x9] sm:$0xff]
    %v58 = vsub.f32 %v56, %v55
    %v59 = vsub.f32 %v57, %v55
    %v60 = vld [vmem:[%s8] sm:$0xff]
    %v61 = vld [vmem:[%s1] sm:$0x7]
    %v62 = vlaneseq
    %v63 = vshrl.u32 %v62, 7
    %v64 = vadd.s32 %v63, 8
    %v65 = vld [vmem:[%s0] sm:$0xff]
    %v66 = vld [vmem:[%s0 + $0x8] sm:$0xff]
    %v67 = vlaneseq
    %v68 = vshrl.u32 %v67, 7
    %v69 = vsub.s32 0, %v68
    %v70 = vrot.slane %v61, %v69
    %v71 = vmul.f32 %v65, %v70
    %v72 = vmul.f32 %v66, %v70
    %vm73 = vcmp.ge.s32.totalorder %v63, 1
    %vm74 = vcmp.ge.s32.totalorder %v64, 1
    %vm75 = vcmp.lt.s32.totalorder %v63, 17
    %vm76 = vcmp.lt.s32.totalorder %v64, 17
    %vm77 = vmand %vm73, %vm75
    %vm78 = vmand %vm74, %vm76
    %v79 = vsel %vm77, 1, 0
    %v80 = vsel %vm78, 1, 0
    %v81 = vcvt.s32.f32 %v79
    %v82 = vcvt.s32.f32 %v80
    %v83 = vmul.f32 %v81, %v70
    %v84 = vmul.f32 %v82, %v70
    %v85 = vlaneseq
    %v86 = vshrl.u32 %v85, 7
    %v87 = vsub.s32 1, %v86
    %v88 = vrot.slane %v61, %v87
    %v89 = vmul.f32 %v56, %v88
    %v90 = vmul.f32 %v57, %v88
    %v91 = vadd.f32 %v71, %v89
    %v92 = vadd.f32 %v72, %v90
    %vm93 = vcmp.ge.s32.totalorder %v63, 0
    %vm94 = vcmp.ge.s32.totalorder %v64, 0
    %vm95 = vcmp.lt.s32.totalorder %v63, 16
    %vm96 = vcmp.lt.s32.totalorder %v64, 16
    %vm97 = vmand %vm93, %vm95
    %vm98 = vmand %vm94, %vm96
    %v99 = vsel %vm97, 1, 0
    %v100 = vsel %vm98, 1, 0
    %v101 = vcvt.s32.f32 %v99
    %v102 = vcvt.s32.f32 %v100
    %v103 = vmul.f32 %v101, %v88
    %v104 = vmul.f32 %v102, %v88
    %v105 = vadd.f32 %v83, %v103
    %v106 = vadd.f32 %v84, %v104
    %v107 = vld [vmem:[%s0 + $0x2] sm:$0xff]
    %v108 = vld [vmem:[%s0 + $0xa] sm:$0xff]
    %v109 = vlaneseq
    %v110 = vshrl.u32 %v109, 7
    %v111 = vsub.s32 2, %v110
    %v112 = vrot.slane %v61, %v111
    %v113 = vmul.f32 %v107, %v112
    %v114 = vmul.f32 %v108, %v112
    %v115 = vadd.f32 %v91, %v113
    %v116 = vadd.f32 %v92, %v114
    %vm117 = vcmp.ge.s32.totalorder %v63, 4294967295
    %vm118 = vcmp.ge.s32.totalorder %v64, 4294967295
    %vm119 = vcmp.lt.s32.totalorder %v63, 15
    %vm120 = vcmp.lt.s32.totalorder %v64, 15
    %vm121 = vmand %vm117, %vm119
    %vm122 = vmand %vm118, %vm120
    %v123 = vsel %vm121, 1, 0
    %v124 = vsel %vm122, 1, 0
    %v125 = vcvt.s32.f32 %v123
    %v126 = vcvt.s32.f32 %v124
    %v127 = vmul.f32 %v125, %v112
    %v128 = vmul.f32 %v126, %v112
    %v129 = vadd.f32 %v105, %v127
    %v130 = vadd.f32 %v106, %v128
    %v131 = vmul.f32 %v55, %v129
    %v132 = vmul.f32 %v55, %v130
    %v133 = vsub.f32 %v115, %v131
    %v134 = vsub.f32 %v116, %v132
    %v135 = vld [vmem:[%s2] sm:$0x1]
    %v137 = vlaneseq
    %v138 = vshrl.u32 %v137, 7
    %v139 = vsub.s32 0, %v138
    %v140 = vrot.slane %v135, %v139
    %v142 = vadd.f32 %v133, %v140
    %v143 = vadd.f32 %v134, %v140
    %v144 = vsel %vm42, %v142, 0.0
    %v145 = vsel %vm42, %v143, 0.0
    %v146 = vadd.f32 %v144, %v145
    %v147 = vrot.slane %v146, 4
    %v148 = vadd.f32 %v146, %v147
    %v149 = vrot.slane %v148, 2
    %v150 = vadd.f32 %v148, %v149
    %v151 = vrot.slane %v150, 1
    %v152 = vadd.f32 %v150, %v151
    %v153 = vrcp.pop 16.0
    %v154 = vmul.f32 %v152, %v153
    %v155 = vld [vmem:[%s4] sm:$0xff]
    %v156 = vld [vmem:[%s4 + $0x8] sm:$0xff]
    %v158 = vsel %vm42, %v154, 0
    %160 = vmatprep.subr.mxu0 0.0
    %161 = vmatpush1.msra.mxu0 %v155
    %162 = vmatprep.subr.mxu0 0.0
    %163 = vmatpush1.msra.mxu0 %v156
    %164 = vmatprep.subr.mxu0 0.0
    %165 = vmatpush1.msra.mxu0 0.0
    %166 = vmatprep.subr.mxu0 0.0
    %167 = vmatpush1.msra.mxu0 0.0
    %168 = vmatprep.subr.mxu0 0.0
    %169 = vmatpush1.msra.mxu0 0.0
    %170 = vmatprep.subr.mxu0 0.0
    %171 = vmatpush1.msra.mxu0 0.0
    %172 = vmatprep.subr.mxu0 0.0
    %173 = vmatpush1.msra.mxu0 0.0
    %174 = vmatprep.subr.mxu0 0.0
    %175 = vmatpush1.msra.mxu0 0.0
    %176 = vmatprep.subr.mxu0 0.0
    %177 = vmatpush1.msra.mxu0 0.0
    %178 = vmatprep.subr.mxu0 0.0
    %179 = vmatpush1.msra.mxu0 0.0
    %180 = vmatprep.subr.mxu0 0.0
    %181 = vmatpush1.msra.mxu0 0.0
    %182 = vmatprep.subr.mxu0 0.0
    %183 = vmatpush1.msra.mxu0 0.0
    %184 = vmatprep.subr.mxu0 0.0
    %185 = vmatpush1.msra.mxu0 0.0
    %186 = vmatprep.subr.mxu0 0.0
    %187 = vmatpush1.msra.mxu0 0.0
    %188 = vmatprep.subr.mxu0 0.0
    %189 = vmatpush1.msra.mxu0 0.0
    %190 = vmatprep.subr.mxu0 0.0
    %191 = vmatpush1.msra.mxu0 0.0
    %192 = vmatprep.subr.mxu0 0.0
    %193 = vmatpush1.msra.mxu0 0.0
    %194 = vmatprep.subr.mxu0 0.0
    %195 = vmatpush1.msra.mxu0 0.0
    %196 = vmatprep.subr.mxu0 0.0
    %197 = vmatpush1.msra.mxu0 0.0
    %198 = vmatprep.subr.mxu0 0.0
    %199 = vmatpush1.msra.mxu0 0.0
    %200 = vmatprep.subr.mxu0 0.0
    %201 = vmatpush1.msra.mxu0 0.0
    %202 = vmatprep.subr.mxu0 0.0
    %203 = vmatpush1.msra.mxu0 0.0
    %204 = vmatprep.subr.mxu0 0.0
    %205 = vmatpush1.msra.mxu0 0.0
    %206 = vmatprep.subr.mxu0 0.0
    %207 = vmatpush1.msra.mxu0 0.0
    %208 = vmatprep.subr.mxu0 0.0
    %209 = vmatpush1.msra.mxu0 0.0
    %210 = vmatprep.subr.mxu0 0.0
    %211 = vmatpush1.msra.mxu0 0.0
    %212 = vmatprep.subr.mxu0 0.0
    %213 = vmatpush1.msra.mxu0 0.0
    %214 = vmatprep.subr.mxu0 0.0
    %215 = vmatpush1.msra.mxu0 0.0
    %216 = vmatprep.subr.mxu0 0.0
    %217 = vmatpush1.msra.mxu0 0.0
    %218 = vmatprep.subr.mxu0 0.0
    %219 = vmatpush1.msra.mxu0 0.0
    %220 = vmatprep.subr.mxu0 0.0
    %221 = vmatpush1.msra.mxu0 0.0
    %222 = vmatprep.subr.mxu0 0.0
    %223 = vmatpush1.msra.mxu0 0.0
    %224 = vmatprep.mubr.f32.mxu0 0.0
    %225 = vmatmul.mubr.f32.gmra.mrb[0].mxu0 %v158
    %v226 = vpop.f32.mrb[0].mxu0
    %v227 = vadd.f32 0.0, %v226
    %v228 = vpop.f32.mrb[0].mxu0
    %229 = vdwg.mxu0
    %v230 = vmax.f32 %v227, 0.0
    %v231 = vld [vmem:[%s5] sm:$0xff]
    %vm232 = vcmask 64512
    %v234 = vsel %vm232, %v230, 0
    %236 = vmatprep.subr.mxu0 0.0
    %237 = vmatpush1.msra.mxu0 %v231
    %238 = vmatprep.subr.mxu0 0.0
    %239 = vmatpush1.msra.mxu0 0.0
    %240 = vmatprep.subr.mxu0 0.0
    %241 = vmatpush1.msra.mxu0 0.0
    %242 = vmatprep.subr.mxu0 0.0
    %243 = vmatpush1.msra.mxu0 0.0
    %244 = vmatprep.subr.mxu0 0.0
    %245 = vmatpush1.msra.mxu0 0.0
    %246 = vmatprep.subr.mxu0 0.0
    %247 = vmatpush1.msra.mxu0 0.0
    %248 = vmatprep.subr.mxu0 0.0
    %249 = vmatpush1.msra.mxu0 0.0
    %250 = vmatprep.subr.mxu0 0.0
    %251 = vmatpush1.msra.mxu0 0.0
    %252 = vmatprep.subr.mxu0 0.0
    %253 = vmatpush1.msra.mxu0 0.0
    %254 = vmatprep.subr.mxu0 0.0
    %255 = vmatpush1.msra.mxu0 0.0
    %256 = vmatprep.subr.mxu0 0.0
    %257 = vmatpush1.msra.mxu0 0.0
    %258 = vmatprep.subr.mxu0 0.0
    %259 = vmatpush1.msra.mxu0 0.0
    %260 = vmatprep.subr.mxu0 0.0
    %261 = vmatpush1.msra.mxu0 0.0
    %262 = vmatprep.subr.mxu0 0.0
    %263 = vmatpush1.msra.mxu0 0.0
    %264 = vmatprep.subr.mxu0 0.0
    %265 = vmatpush1.msra.mxu0 0.0
    %266 = vmatprep.subr.mxu0 0.0
    %267 = vmatpush1.msra.mxu0 0.0
    %268 = vmatprep.subr.mxu0 0.0
    %269 = vmatpush1.msra.mxu0 0.0
    %270 = vmatprep.subr.mxu0 0.0
    %271 = vmatpush1.msra.mxu0 0.0
    %272 = vmatprep.subr.mxu0 0.0
    %273 = vmatpush1.msra.mxu0 0.0
    %274 = vmatprep.subr.mxu0 0.0
    %275 = vmatpush1.msra.mxu0 0.0
    %276 = vmatprep.subr.mxu0 0.0
    %277 = vmatpush1.msra.mxu0 0.0
    %278 = vmatprep.subr.mxu0 0.0
    %279 = vmatpush1.msra.mxu0 0.0
    %280 = vmatprep.subr.mxu0 0.0
    %281 = vmatpush1.msra.mxu0 0.0
    %282 = vmatprep.subr.mxu0 0.0
    %283 = vmatpush1.msra.mxu0 0.0
    %284 = vmatprep.subr.mxu0 0.0
    %285 = vmatpush1.msra.mxu0 0.0
    %286 = vmatprep.subr.mxu0 0.0
    %287 = vmatpush1.msra.mxu0 0.0
    %288 = vmatprep.subr.mxu0 0.0
    %289 = vmatpush1.msra.mxu0 0.0
    %290 = vmatprep.subr.mxu0 0.0
    %291 = vmatpush1.msra.mxu0 0.0
    %292 = vmatprep.subr.mxu0 0.0
    %293 = vmatpush1.msra.mxu0 0.0
    %294 = vmatprep.subr.mxu0 0.0
    %295 = vmatpush1.msra.mxu0 0.0
    %296 = vmatprep.subr.mxu0 0.0
    %297 = vmatpush1.msra.mxu0 0.0
    %298 = vmatprep.subr.mxu0 0.0
    %299 = vmatpush1.msra.mxu0 0.0
    %300 = vmatprep.mubr.f32.mxu0 0.0
    %301 = vmatmul.mubr.f32.gmra.mrb[0].mxu0 %v234
    %v302 = vpop.f32.mrb[0].mxu0
    %v303 = vadd.f32 0.0, %v302
    %v304 = vpop.f32.mrb[0].mxu0
    %305 = vdwg.mxu0
    %v306 = vmul.f32 %v303, 0.5
    %v307 = vtanh.pop %v306
    %v308 = vadd.f32 %v307, 1.0
    %v309 = vmul.f32 %v308, 0.5
    %v310 = vlaneseq
    %v311 = vshrl.u32 %v310, 7
    %v312 = vsub.s32 0, %v311
    %v313 = vrot.slane %v309, %v312
    %v314 = vmul.f32 %v142, %v313
    %v315 = vmul.f32 %v143, %v313
    %v316 = vld [vmem:[%s6] sm:$0xff]
    %v317 = vld [vmem:[%s6 + $0x8] sm:$0xff]
    %v319 = vsel %vm42, %v314, 0
    %v322 = vsel %vm42, %v315, 0
    %324 = vmatprep.subr.mxu0 0.0
    %325 = vmatpush1.msra.mxu0 %v316
    %326 = vmatprep.subr.mxu0 0.0
    %327 = vmatpush1.msra.mxu0 %v317
    %328 = vmatprep.subr.mxu0 0.0
    %329 = vmatpush1.msra.mxu0 0.0
    %330 = vmatprep.subr.mxu0 0.0
    %331 = vmatpush1.msra.mxu0 0.0
    %332 = vmatprep.subr.mxu0 0.0
    %333 = vmatpush1.msra.mxu0 0.0
    %334 = vmatprep.subr.mxu0 0.0
    %335 = vmatpush1.msra.mxu0 0.0
    %336 = vmatprep.subr.mxu0 0.0
    %337 = vmatpush1.msra.mxu0 0.0
    %338 = vmatprep.subr.mxu0 0.0
    %339 = vmatpush1.msra.mxu0 0.0
    %340 = vmatprep.subr.mxu0 0.0
    %341 = vmatpush1.msra.mxu0 0.0
    %342 = vmatprep.subr.mxu0 0.0
    %343 = vmatpush1.msra.mxu0 0.0
    %344 = vmatprep.subr.mxu0 0.0
    %345 = vmatpush1.msra.mxu0 0.0
    %346 = vmatprep.subr.mxu0 0.0
    %347 = vmatpush1.msra.mxu0 0.0
    %348 = vmatprep.subr.mxu0 0.0
    %349 = vmatpush1.msra.mxu0 0.0
    %350 = vmatprep.subr.mxu0 0.0
    %351 = vmatpush1.msra.mxu0 0.0
    %352 = vmatprep.subr.mxu0 0.0
    %353 = vmatpush1.msra.mxu0 0.0
    %354 = vmatprep.subr.mxu0 0.0
    %355 = vmatpush1.msra.mxu0 0.0
    %356 = vmatprep.subr.mxu0 0.0
    %357 = vmatpush1.msra.mxu0 0.0
    %358 = vmatprep.subr.mxu0 0.0
    %359 = vmatpush1.msra.mxu0 0.0
    %360 = vmatprep.subr.mxu0 0.0
    %361 = vmatpush1.msra.mxu0 0.0
    %362 = vmatprep.subr.mxu0 0.0
    %363 = vmatpush1.msra.mxu0 0.0
    %364 = vmatprep.subr.mxu0 0.0
    %365 = vmatpush1.msra.mxu0 0.0
    %366 = vmatprep.subr.mxu0 0.0
    %367 = vmatpush1.msra.mxu0 0.0
    %368 = vmatprep.subr.mxu0 0.0
    %369 = vmatpush1.msra.mxu0 0.0
    %370 = vmatprep.subr.mxu0 0.0
    %371 = vmatpush1.msra.mxu0 0.0
    %372 = vmatprep.subr.mxu0 0.0
    %373 = vmatpush1.msra.mxu0 0.0
    %374 = vmatprep.subr.mxu0 0.0
    %375 = vmatpush1.msra.mxu0 0.0
    %376 = vmatprep.subr.mxu0 0.0
    %377 = vmatpush1.msra.mxu0 0.0
    %378 = vmatprep.subr.mxu0 0.0
    %379 = vmatpush1.msra.mxu0 0.0
    %380 = vmatprep.subr.mxu0 0.0
    %381 = vmatpush1.msra.mxu0 0.0
    %382 = vmatprep.subr.mxu0 0.0
    %383 = vmatpush1.msra.mxu0 0.0
    %384 = vmatprep.subr.mxu0 0.0
    %385 = vmatpush1.msra.mxu0 0.0
    %386 = vmatprep.subr.mxu0 0.0
    %387 = vmatpush1.msra.mxu0 0.0
    %388 = vmatprep.mubr.f32.mxu0 0.0
    %389 = vmatmul.mubr.f32.gmra.mrb[0].mxu0 %v319
    %v390 = vpop.f32.mrb[0].mxu0
    %v391 = vadd.f32 0.0, %v390
    %v392 = vpop.f32.mrb[0].mxu0
    %393 = vmatprep.mubr.f32.mxu0 0.0
    %394 = vmatmul.mubr.f32.gmra.mrb[0].mxu0 %v322
    %v395 = vpop.f32.mrb[0].mxu0
    %v396 = vadd.f32 0.0, %v395
    %v397 = vpop.f32.mrb[0].mxu0
    %398 = vdwg.mxu0
    %vm399 = vcmask 8192
    %400 = vst.msk [vmem:[#allocation2] sm:$0x1] %vm399, 0.0
    %401 = vst.msk [vmem:[#allocation2 + $0x11] sm:$0x1] %vm399, 0.0
    %vm402 = vcmask 15360
    %403 = vst.msk [vmem:[#allocation2 + $0x1] sm:$0xff] %vm402, %v391
    %404 = vst.msk [vmem:[#allocation2 + $0x9] sm:$0xff] %vm402, %v396
    %v405 = vld [vmem:[%s3] sm:$0x7]
    %v406 = vld [vmem:[#allocation2] sm:$0xff]
    %v407 = vld [vmem:[#allocation2 + $0x8] sm:$0xff]
    %v408 = vlaneseq
    %v409 = vshrl.u32 %v408, 7
    %v410 = vsub.s32 0, %v409
    %v411 = vrot.slane %v405, %v410
    %v412 = vmul.f32 %v406, %v411
    %v413 = vmul.f32 %v407, %v411
    %v414 = vld [vmem:[#allocation2 + $0x1] sm:$0xff]
    %v415 = vld [vmem:[#allocation2 + $0x9] sm:$0xff]
    %v416 = vlaneseq
    %v417 = vshrl.u32 %v416, 7
    %v418 = vsub.s32 1, %v417
    %v419 = vrot.slane %v405, %v418
    %v420 = vmul.f32 %v414, %v419
    %v421 = vmul.f32 %v415, %v419
    %v422 = vadd.f32 %v412, %v420
    %v423 = vadd.f32 %v413, %v421
    %v424 = vld [vmem:[#allocation2 + $0x2] sm:$0xff]
    %v425 = vld [vmem:[#allocation2 + $0xa] sm:$0xff]
    %v426 = vlaneseq
    %v427 = vshrl.u32 %v426, 7
    %v428 = vsub.s32 2, %v427
    %v429 = vrot.slane %v405, %v428
    %v430 = vmul.f32 %v424, %v429
    %v431 = vmul.f32 %v425, %v429
    %v432 = vadd.f32 %v422, %v430
    %v433 = vadd.f32 %v423, %v431
    %v434 = vmul.f32 %v432, 0.5
    %v435 = vmul.f32 %v433, 0.5
    %v436 = vtanh.pop %v434
    %v437 = vtanh.pop %v435
    %v438 = vadd.f32 %v436, 1.0
    %v439 = vadd.f32 %v437, 1.0
    %v440 = vmul.f32 %v438, 0.5
    %v441 = vmul.f32 %v439, 0.5
    %v442 = vld [vmem:[%s7] sm:$0x3]
    %v444 = vsel %vm402, %v440, 0
    %v447 = vsel %vm402, %v441, 0
    %vm449 = vcmask 1041408
    %v451 = vsel %vm449, %v442, 0
    %453 = vmatprep.subr.mxu0 0.0
    %454 = vmatpush1.msra.mxu0 %v451
    %455 = vmatprep.subr.mxu0 0.0
    %456 = vmatpush1.msra.mxu0 0.0
    %457 = vmatprep.subr.mxu0 0.0
    %458 = vmatpush1.msra.mxu0 0.0
    %459 = vmatprep.subr.mxu0 0.0
    %460 = vmatpush1.msra.mxu0 0.0
    %461 = vmatprep.subr.mxu0 0.0
    %462 = vmatpush1.msra.mxu0 0.0
    %463 = vmatprep.subr.mxu0 0.0
    %464 = vmatpush1.msra.mxu0 0.0
    %465 = vmatprep.subr.mxu0 0.0
    %466 = vmatpush1.msra.mxu0 0.0
    %467 = vmatprep.subr.mxu0 0.0
    %468 = vmatpush1.msra.mxu0 0.0
    %469 = vmatprep.subr.mxu0 0.0
    %470 = vmatpush1.msra.mxu0 0.0
    %471 = vmatprep.subr.mxu0 0.0
    %472 = vmatpush1.msra.mxu0 0.0
    %473 = vmatprep.subr.mxu0 0.0
    %474 = vmatpush1.msra.mxu0 0.0
    %475 = vmatprep.subr.mxu0 0.0
    %476 = vmatpush1.msra.mxu0 0.0
    %477 = vmatprep.subr.mxu0 0.0
    %478 = vmatpush1.msra.mxu0 0.0
    %479 = vmatprep.subr.mxu0 0.0
    %480 = vmatpush1.msra.mxu0 0.0
    %481 = vmatprep.subr.mxu0 0.0
    %482 = vmatpush1.msra.mxu0 0.0
    %483 = vmatprep.subr.mxu0 0.0
    %484 = vmatpush1.msra.mxu0 0.0
    %485 = vmatprep.subr.mxu0 0.0
    %486 = vmatpush1.msra.mxu0 0.0
    %487 = vmatprep.subr.mxu0 0.0
    %488 = vmatpush1.msra.mxu0 0.0
    %489 = vmatprep.subr.mxu0 0.0
    %490 = vmatpush1.msra.mxu0 0.0
    %491 = vmatprep.subr.mxu0 0.0
    %492 = vmatpush1.msra.mxu0 0.0
    %493 = vmatprep.subr.mxu0 0.0
    %494 = vmatpush1.msra.mxu0 0.0
    %495 = vmatprep.subr.mxu0 0.0
    %496 = vmatpush1.msra.mxu0 0.0
    %497 = vmatprep.subr.mxu0 0.0
    %498 = vmatpush1.msra.mxu0 0.0
    %499 = vmatprep.subr.mxu0 0.0
    %500 = vmatpush1.msra.mxu0 0.0
    %501 = vmatprep.subr.mxu0 0.0
    %502 = vmatpush1.msra.mxu0 0.0
    %503 = vmatprep.subr.mxu0 0.0
    %504 = vmatpush1.msra.mxu0 0.0
    %505 = vmatprep.subr.mxu0 0.0
    %506 = vmatpush1.msra.mxu0 0.0
    %507 = vmatprep.subr.mxu0 0.0
    %508 = vmatpush1.msra.mxu0 0.0
    %509 = vmatprep.subr.mxu0 0.0
    %510 = vmatpush1.msra.mxu0 0.0
    %511 = vmatprep.subr.mxu0 0.0
    %512 = vmatpush1.msra.mxu0 0.0
    %513 = vmatprep.subr.mxu0 0.0
    %514 = vmatpush1.msra.mxu0 0.0
    %515 = vmatprep.subr.mxu0 0.0
    %516 = vmatpush1.msra.mxu0 0.0
    %517 = vmatprep.mubr.f32.mxu0 0.0
    %518 = vmatmul.mubr.f32.gmra.mrb[0].mxu0 %v444
    %v519 = vpop.f32.mrb[0].mxu0
    %v520 = vadd.f32 0.0, %v519
    %v521 = vpop.f32.mrb[0].mxu0
    %522 = vmatprep.mubr.f32.mxu0 0.0
    %523 = vmatmul.mubr.f32.gmra.mrb[0].mxu0 %v447
    %v524 = vpop.f32.mrb[0].mxu0
    %v525 = vadd.f32 0.0, %v524
    %v526 = vpop.f32.mrb[0].mxu0
    %527 = vdwg.mxu0
    %v528 = vmul.f32 %v520, %v314
    %v529 = vmul.f32 %v525, %v315
    %v530 = vld [vmem:[%s9] sm:$0xff]
    %v532 = vsel %vm42, %v530, 0
    %534 = vmatprep.subr.mxu0 0.0
    %535 = vmatpush1.msra.mxu0 %v528
    %536 = vmatprep.subr.mxu0 0.0
    %537 = vmatpush1.msra.mxu0 %v529
    %538 = vmatprep.subr.mxu0 0.0
    %539 = vmatpush1.msra.mxu0 0.0
    %540 = vmatprep.subr.mxu0 0.0
    %541 = vmatpush1.msra.mxu0 0.0
    %542 = vmatprep.subr.mxu0 0.0
    %543 = vmatpush1.msra.mxu0 0.0
    %544 = vmatprep.subr.mxu0 0.0
    %545 = vmatpush1.msra.mxu0 0.0
    %546 = vmatprep.subr.mxu0 0.0
    %547 = vmatpush1.msra.mxu0 0.0
    %548 = vmatprep.subr.mxu0 0.0
    %549 = vmatpush1.msra.mxu0 0.0
    %550 = vmatprep.subr.mxu0 0.0
    %551 = vmatpush1.msra.mxu0 0.0
    %552 = vmatprep.subr.mxu0 0.0
    %553 = vmatpush1.msra.mxu0 0.0
    %554 = vmatprep.subr.mxu0 0.0
    %555 = vmatpush1.msra.mxu0 0.0
    %556 = vmatprep.subr.mxu0 0.0
    %557 = vmatpush1.msra.mxu0 0.0
    %558 = vmatprep.subr.mxu0 0.0
    %559 = vmatpush1.msra.mxu0 0.0
    %560 = vmatprep.subr.mxu0 0.0
    %561 = vmatpush1.msra.mxu0 0.0
    %562 = vmatprep.subr.mxu0 0.0
    %563 = vmatpush1.msra.mxu0 0.0
    %564 = vmatprep.subr.mxu0 0.0
    %565 = vmatpush1.msra.mxu0 0.0
    %566 = vmatprep.subr.mxu0 0.0
    %567 = vmatpush1.msra.mxu0 0.0
    %568 = vmatprep.subr.mxu0 0.0
    %569 = vmatpush1.msra.mxu0 0.0
    %570 = vmatprep.subr.mxu0 0.0
    %571 = vmatpush1.msra.mxu0 0.0
    %572 = vmatprep.subr.mxu0 0.0
    %573 = vmatpush1.msra.mxu0 0.0
    %574 = vmatprep.subr.mxu0 0.0
    %575 = vmatpush1.msra.mxu0 0.0
    %576 = vmatprep.subr.mxu0 0.0
    %577 = vmatpush1.msra.mxu0 0.0
    %578 = vmatprep.subr.mxu0 0.0
    %579 = vmatpush1.msra.mxu0 0.0
    %580 = vmatprep.subr.mxu0 0.0
    %581 = vmatpush1.msra.mxu0 0.0
    %582 = vmatprep.subr.mxu0 0.0
    %583 = vmatpush1.msra.mxu0 0.0
    %584 = vmatprep.subr.mxu0 0.0
    %585 = vmatpush1.msra.mxu0 0.0
    %586 = vmatprep.subr.mxu0 0.0
    %587 = vmatpush1.msra.mxu0 0.0
    %588 = vmatprep.subr.mxu0 0.0
    %589 = vmatpush1.msra.mxu0 0.0
    %590 = vmatprep.subr.mxu0 0.0
    %591 = vmatpush1.msra.mxu0 0.0
    %592 = vmatprep.subr.mxu0 0.0
    %593 = vmatpush1.msra.mxu0 0.0
    %594 = vmatprep.subr.mxu0 0.0
    %595 = vmatpush1.msra.mxu0 0.0
    %596 = vmatprep.subr.mxu0 0.0
    %597 = vmatpush1.msra.mxu0 0.0
    %598 = vmatprep.mubr.f32.mxu0 0.0
    %599 = vmatmul.mubr.f32.gmra.mrb[0].mxu0 %v532
    %v600 = vpop.f32.mrb[0].mxu0
    %v601 = vadd.f32 0.0, %v600
    %v602 = vpop.f32.mrb[0].mxu0
    %603 = vdwg.mxu0
    %v605 = vsel %vm42, %v60, 0
    %607 = vmatprep.subr.mxu0 0.0
    %608 = vmatpush1.msra.mxu0 %v58
    %609 = vmatprep.subr.mxu0 0.0
    %610 = vmatpush1.msra.mxu0 %v59
    %611 = vmatprep.subr.mxu0 0.0
    %612 = vmatpush1.msra.mxu0 0.0
    %613 = vmatprep.subr.mxu0 0.0
    %614 = vmatpush1.msra.mxu0 0.0
    %615 = vmatprep.subr.mxu0 0.0
    %616 = vmatpush1.msra.mxu0 0.0
    %617 = vmatprep.subr.mxu0 0.0
    %618 = vmatpush1.msra.mxu0 0.0
    %619 = vmatprep.subr.mxu0 0.0
    %620 = vmatpush1.msra.mxu0 0.0
    %621 = vmatprep.subr.mxu0 0.0
    %622 = vmatpush1.msra.mxu0 0.0
    %623 = vmatprep.subr.mxu0 0.0
    %624 = vmatpush1.msra.mxu0 0.0
    %625 = vmatprep.subr.mxu0 0.0
    %626 = vmatpush1.msra.mxu0 0.0
    %627 = vmatprep.subr.mxu0 0.0
    %628 = vmatpush1.msra.mxu0 0.0
    %629 = vmatprep.subr.mxu0 0.0
    %630 = vmatpush1.msra.mxu0 0.0
    %631 = vmatprep.subr.mxu0 0.0
    %632 = vmatpush1.msra.mxu0 0.0
    %633 = vmatprep.subr.mxu0 0.0
    %634 = vmatpush1.msra.mxu0 0.0
    %635 = vmatprep.subr.mxu0 0.0
    %636 = vmatpush1.msra.mxu0 0.0
    %637 = vmatprep.subr.mxu0 0.0
    %638 = vmatpush1.msra.mxu0 0.0
    %639 = vmatprep.subr.mxu0 0.0
    %640 = vmatpush1.msra.mxu0 0.0
    %641 = vmatprep.subr.mxu0 0.0
    %642 = vmatpush1.msra.mxu0 0.0
    %643 = vmatprep.subr.mxu0 0.0
    %644 = vmatpush1.msra.mxu0 0.0
    %645 = vmatprep.subr.mxu0 0.0
    %646 = vmatpush1.msra.mxu0 0.0
    %647 = vmatprep.subr.mxu0 0.0
    %648 = vmatpush1.msra.mxu0 0.0
    %649 = vmatprep.subr.mxu0 0.0
    %650 = vmatpush1.msra.mxu0 0.0
    %651 = vmatprep.subr.mxu0 0.0
    %652 = vmatpush1.msra.mxu0 0.0
    %653 = vmatprep.subr.mxu0 0.0
    %654 = vmatpush1.msra.mxu0 0.0
    %655 = vmatprep.subr.mxu0 0.0
    %656 = vmatpush1.msra.mxu0 0.0
    %657 = vmatprep.subr.mxu0 0.0
    %658 = vmatpush1.msra.mxu0 0.0
    %659 = vmatprep.subr.mxu0 0.0
    %660 = vmatpush1.msra.mxu0 0.0
    %661 = vmatprep.subr.mxu0 0.0
    %662 = vmatpush1.msra.mxu0 0.0
    %663 = vmatprep.subr.mxu0 0.0
    %664 = vmatpush1.msra.mxu0 0.0
    %665 = vmatprep.subr.mxu0 0.0
    %666 = vmatpush1.msra.mxu0 0.0
    %667 = vmatprep.subr.mxu0 0.0
    %668 = vmatpush1.msra.mxu0 0.0
    %669 = vmatprep.subr.mxu0 0.0
    %670 = vmatpush1.msra.mxu0 0.0
    %671 = vmatprep.mubr.f32.mxu0 0.0
    %672 = vmatmul.mubr.f32.gmra.mrb[0].mxu0 %v605
    %v673 = vpop.f32.mrb[0].mxu0
    %v674 = vadd.f32 %v601, %v673
    %v675 = vpop.f32.mrb[0].mxu0
    %676 = vdwg.mxu0
    %v677 = vld [vmem:[%s10] sm:$0xff]
    %679 = vset.pattern.permute.xlu0 0
    %680 = vperm.xlu0 %679, %v677
    %v681 = vpop.permute.xlu0 %680
    %v683 = vadd.f32 %v674, %v681
    %v684 = vadd.f32 %v683, %v55
    %685 = vst.msk [vmem:[#allocation3] sm:$0xff] %vm42, %v684
    // Predicated region
    $region46: #{tpu_custom_call.1} parent=1 // pred_check
      _
    $region47: #{tpu_custom_call.1} parent=1 // pred_check_branch
      %687 = sbr.rel (0) target = $region49
    $region48: #{tpu_custom_call.1} parent=1 // pred_region
      %s689 = ssub.s32 128, 128
      %690 = vsyncadd [#allocation4], %s689
      %s692 = sshll.u32 [#allocation3], 4
      %s693 = int_to_ptr.vmem [resolvable:$true] %s692
      %695 = dma.vmem_to_hbm [thread:$0]  %s693, 128, %s11, [#allocation4]
    $region49: #{tpu_custom_call.1} parent=1 // pred_fallthru
      _
    // Predicated region
    $region50: #{tpu_custom_call.1} parent=1 // pred_check
      _
    $region51: #{tpu_custom_call.1} parent=1 // pred_check_branch
      %697 = sbr.rel (0) target = $region53
    $region52: #{tpu_custom_call.1} parent=1 // pred_region
      %698 = dma.done [#allocation4], 128
    $region53: #{tpu_custom_call.1} parent=1 // pred_fallthru
      _
    %699 = vsyncpa [#allocation4], 1

</llo_original>
